<compile_context>
chip_gen: v7x
topology: tpu7x:2x2x1
jax: 0.10.0
libtpu: 0.0.40
codegen_flags: <defaults>
</compile_context>

<pallas_src>
import functools

import jax
import jax.numpy as jnp
from jax.experimental import pallas as pl
from jax.experimental.pallas import tpu as pltpu


def _round_up(x, m):
    return (x + m - 1) // m * m


def _gating_kernel(x_ref, w_ref, b_ref, sparse_ref, idx_ref, logit_ref, *, topk):
    # Cast activations to bf16 in-kernel (MXU inputs), accumulate in f32.
    x_bf = x_ref[...].astype(jnp.bfloat16)
    logits = jnp.dot(x_bf, w_ref[...], preferred_element_type=jnp.float32)
    logits = logits + b_ref[...]
    logit_ref[...] = logits

    t, e = logits.shape
    k_out = idx_ref.shape[-1]
    col_ids = jax.lax.broadcasted_iota(jnp.int32, (t, e), 1)
    slot_ids = jax.lax.broadcasted_iota(jnp.int32, (t, k_out), 1)

    # Packed sortable key: high bits = order-preserving int32 image of the f32
    # logit, low bits = complemented expert index (larger key <-> smaller
    # index, so ties break toward the smallest expert).
    idx_bits = max(1, (e - 1).bit_length())
    low_mask = jnp.int32((1 << idx_bits) - 1)
    bits = jax.lax.bitcast_convert_type(logits, jnp.int32)
    mono = jnp.where(bits < 0, ~(bits & jnp.int32(0x7FFFFFFF)), bits)
    keyed = (mono & ~low_mask) | (low_mask - col_ids)

    neg_key = jnp.int32(jnp.iinfo(jnp.int32).min)
    idx_slab = jnp.zeros((t, k_out), jnp.int32)
    for k in range(topk):  # static unroll; topk is small
        pmax = jnp.max(keyed, axis=-1, keepdims=True)            # 1 XLU reduce
        idx_k = low_mask - (pmax & low_mask)                     # (t, 1)
        sel = col_ids == idx_k                                   # (t, e) compare
        keyed = jnp.where(sel, neg_key, keyed)                   # (t, e) select
        idx_slab = jnp.where(slot_ids == k, idx_k, idx_slab)     # tiny
    idx_ref[...] = idx_slab

    # Masked softmax over the selected experts only (== torch's -inf scatter +
    # softmax; non-selected experts get exact zeros). Exact division so every
    # row sums to 1 up to f32 rounding.
    keep = keyed == neg_key
    m0 = jnp.max(logits, axis=-1, keepdims=True)   # row max == max of selected
    p = jnp.where(keep, jnp.exp(logits - m0), jnp.float32(0.0))
    denom = jnp.sum(p, axis=-1, keepdims=True)
    sparse_ref[...] = p / denom


def _vmem_budget_and_limit():
    """(tile-sizing budget, vmem_limit_bytes), gated on the actual chip."""
    cap = None
    try:
        info = pltpu.get_tpu_info()
        cap = int(getattr(info, "vmem_capacity_bytes", 0)) or None
    except Exception:  # not on a TPU device (e.g. interpreter on CPU)
        cap = None
    if cap is None:
        return 36 << 20, 48 << 20              # conservative: safe on v7x 64 MiB
    return int(cap * 0.60), int(cap * 0.85)    # ~77/108 MiB on 128-MiB parts


def prepare_gating_params(w, b):
    """One-time (per parameter update) prep: bf16 gate weight, f32 (1, E) bias.

    Hoisted out of the per-token hot path (review: don't rebuild W/b per call).
    """
    return jnp.asarray(w, jnp.bfloat16), jnp.asarray(b, jnp.float32).reshape(1, -1)


def gating_forward(x, w, b, topk, tile_tokens=2048):
    """x: (B, S, H); w: (H, E) (bf16 preferred, see prepare_gating_params);
    b: (E,) or (1, E).

    Returns: sparse (B, S, E) f32, indices (B, S, topk) int32,
             gate_logit (B*S, E) f32.
    """
    B, S, H = x.shape
    E = w.shape[-1]
    assert 1 <= topk <= E, "topk must be in [1, expert_num]"
    assert E <= 32768, "index packing supports up to 32768 experts"
    T = B * S

    xf = x.reshape(T, H)                           # metadata-only; no cast/pad
    wk = jnp.asarray(w, jnp.bfloat16)              # no-op if already prepared
    bk = jnp.asarray(b, jnp.float32).reshape(1, E)

    # ---- token-tile auto-sizer against a per-generation VMEM budget --------
    E_l = _round_up(E, 128)                        # lane-padded widths in VMEM
    H_l = _round_up(H, 128)
    K_l = _round_up(topk, 128)
    H_8 = _round_up(H, 8)
    x_bytes = jnp.dtype(x.dtype).itemsize
    per_tok = (2 * H_l * x_bytes                              # x block (dbl-buffered)
               + (H_l * 2 if x.dtype != jnp.bfloat16 else 0)  # in-kernel bf16 copy
               + 2 * 2 * E_l * 4                              # sparse + logit blocks
               + 2 * K_l * 4                                  # idx block
               + 6 * E_l * 4)                                 # live epilogue temps
    fixed = 2 * H_8 * E_l * 2 + 2 * 8 * E_l * 4               # W (bf16, dbl-buf) + b
    budget, vmem_limit = _vmem_budget_and_limit()

    tile = max(8, min(_round_up(tile_tokens, 8), _round_up(T, 8)))
    if T > 8:  # keep >= 2 grid steps so both v7x TensorCores get work
        tile = min(tile, max(8, _round_up(-(-T // 2), 8)))
    while tile > 8 and fixed + tile * per_tok > budget:
        tile = max(8, (tile // 2) // 8 * 8)
    if fixed + tile * per_tok > budget:
        # Even tile=8 overflows the budget (huge H*E): raise the limit instead
        # of silently under-provisioning.
        vmem_limit = max(vmem_limit, fixed + tile * per_tok + (8 << 20))

    grid = (pl.cdiv(T, tile),)   # no jnp.pad: Pallas handles the edge block

    kern = functools.partial(_gating_kernel, topk=topk)
    sparse, idx, gate_logit = pl.pallas_call(
        kern,
        out_shape=(
            jax.ShapeDtypeStruct((T, E), jnp.float32),
            jax.ShapeDtypeStruct((T, topk), jnp.int32),
            jax.ShapeDtypeStruct((T, E), jnp.float32),
        ),
        grid=grid,
        in_specs=[
            pl.BlockSpec((tile, H), lambda i: (i, 0)),
            # W / b blocks never change (index_map == (0, 0)) -> DMA'd once.
            # NOTE: on v7x, single-buffering W (pipeline_mode=pl.Buffered(1))
            # would free the dead second buffer for larger tiles at big H.
            pl.BlockSpec((H, E), lambda i: (0, 0)),
            pl.BlockSpec((1, E), lambda i: (0, 0)),
        ],
        out_specs=(
            pl.BlockSpec((tile, E), lambda i: (i, 0)),
            pl.BlockSpec((tile, topk), lambda i: (i, 0)),
            pl.BlockSpec((tile, E), lambda i: (i, 0)),
        ),
        compiler_params=pltpu.CompilerParams(
            dimension_semantics=("parallel",),
            vmem_limit_bytes=int(vmem_limit),
        ),
    )(xf, wk, bk)

    return sparse.reshape(B, S, E), idx.reshape(B, S, topk), gate_logit


if __name__ == "__main__":
    # small config: batch=2, seq=8, hidden=32, expert_num=8, topk=2
    B, S, H, E, TOPK = 2, 8, 32, 8, 2

    key = jax.random.PRNGKey(0)
    kx, kw, kb = jax.random.split(key, 3)
    x = jax.random.normal(kx, (B, S, H), dtype=jnp.float32)
    # nn.Linear-style deterministic init: U(-1/sqrt(H), 1/sqrt(H))
    bound = 1.0 / (H ** 0.5)
    w = jax.random.uniform(kw, (H, E), minval=-bound, maxval=bound, dtype=jnp.float32)
    b = jax.random.uniform(kb, (E,), minval=-bound, maxval=bound, dtype=jnp.float32)

    w_prep, b_prep = prepare_gating_params(w, b)   # hoisted param prep
    sparse, idx, gate_logit = gating_forward(x, w_prep, b_prep, TOPK)
    jax.block_until_ready((sparse, idx, gate_logit))

    # --- sanity checks ---
    # 1) logits vs a reference with the same bf16 input rounding (the kernel
    #    feeds bf16 to the MXU, accumulating in f32).
    xbf = x.reshape(-1, H).astype(jnp.bfloat16).astype(jnp.float32)
    wbf = w.astype(jnp.bfloat16).astype(jnp.float32)
    ref_logits = xbf @ wbf + b
    assert jnp.allclose(gate_logit, ref_logits, atol=2e-3), "logits mismatch"

    # 2) top-k + masked softmax, derived from the kernel's own logits.
    glog = gate_logit.reshape(B, S, E)
    _, ref_idx = jax.lax.top_k(glog, TOPK)
    keep = (jax.nn.one_hot(ref_idx, E) > 0).any(axis=-2)
    ref_sparse = jax.nn.softmax(jnp.where(keep, glog, -jnp.inf), axis=-1)
    assert jnp.allclose(sparse, ref_sparse, atol=1e-4), "sparse mismatch"
    assert jnp.all(jnp.sort(idx, axis=-1) == jnp.sort(ref_idx, axis=-1)), \
        "indices mismatch"
    assert jnp.allclose(sparse.sum(-1), 1.0, atol=1e-4), "softmax not normalized"
    assert idx.dtype == jnp.int32 and sparse.shape == (B, S, E)

    print("KERNEL_OK")
</pallas_src>

<mosaic_0001>
module attributes {stable_mosaic.version = 11 : i64} {
  func.func @_gating_kernel(%arg0: i32, %arg1: memref<8x32xf32, #tpu.memory_space<vmem>>, %arg2: memref<32x8xbf16, #tpu.memory_space<vmem>>, %arg3: memref<1x8xf32, #tpu.memory_space<vmem>>, %arg4: memref<8x8xf32, #tpu.memory_space<vmem>>, %arg5: memref<8x2xi32, #tpu.memory_space<vmem>>, %arg6: memref<8x8xf32, #tpu.memory_space<vmem>>) attributes {dimension_semantics = [#tpu.dimension_semantics<parallel>], iteration_bounds = array<i64: 2>, scalar_prefetch = 0 : i64, scratch_operands = 0 : i64, tpu.core_type = #tpu.core_type<tc>, window_params = [{transform_indices = @transform_0, window_bounds = array<i64: 8, 32>}, {pipeline_mode = #tpu.pipeline_mode<synchronous>, transform_indices = @transform_1, window_bounds = array<i64: 32, 8>}, {pipeline_mode = #tpu.pipeline_mode<synchronous>, transform_indices = @transform_2, window_bounds = array<i64: 1, 8>}, {transform_indices = @transform_3, window_bounds = array<i64: 8, 8>}, {transform_indices = @transform_4, window_bounds = array<i64: 8, 2>}, {transform_indices = @transform_5, window_bounds = array<i64: 8, 8>}]} {
    %c0 = arith.constant 0 : index
    %c0_0 = arith.constant 0 : index
    %0 = vector.load %arg1[%c0, %c0_0] : memref<8x32xf32, #tpu.memory_space<vmem>>, vector<8x32xf32>
    %1 = arith.truncf %0 : vector<8x32xf32> to vector<8x32xbf16>
    %c0_1 = arith.constant 0 : index
    %c0_2 = arith.constant 0 : index
    %2 = vector.load %arg2[%c0_1, %c0_2] : memref<32x8xbf16, #tpu.memory_space<vmem>>, vector<32x8xbf16>
    %cst = arith.constant dense<0.000000e+00> : vector<8x8xf32>
    %3 = tpu.matmul %1, %2, %cst {dimension_numbers = #tpu.dot_dimension_numbers<[1], [0], [0], [1], [0, 0, 1, 1], [], []>} : vector<8x32xbf16>, vector<32x8xbf16>, vector<8x8xf32> -> vector<8x8xf32>
    %c0_3 = arith.constant 0 : index
    %c0_4 = arith.constant 0 : index
    %4 = vector.load %arg3[%c0_3, %c0_4] : memref<1x8xf32, #tpu.memory_space<vmem>>, vector<1x8xf32>
    %5 = vector.broadcast %4 : vector<1x8xf32> to vector<8x8xf32>
    %6 = arith.addf %3, %5 : vector<8x8xf32>
    %c0_5 = arith.constant 0 : index
    %c0_6 = arith.constant 0 : index
    %7 = vector.load %arg6[%c0_5, %c0_6] : memref<8x8xf32, #tpu.memory_space<vmem>>, vector<8x8xf32>
    tpu.vector_store %arg6[%c0_5, %c0_6], %6 {strides = array<i32>} : memref<8x8xf32, #tpu.memory_space<vmem>>, vector<8x8xf32>,
    %8 = tpu.iota {dimensions = array<i32: 1>} : vector<8x8xi32>
    %9 = tpu.iota {dimensions = array<i32: 1>} : vector<8x2xi32>
    %10 = tpu.bitcast %6 : vector<8x8xf32> -> vector<8x8xi32>
    %c0_i32 = arith.constant 0 : i32
    %11 = vector.broadcast %c0_i32 : i32 to vector<8x8xi32>
    %12 = arith.cmpi slt, %10, %11 : vector<8x8xi32>
    %c2147483647_i32 = arith.constant 2147483647 : i32
    %13 = vector.broadcast %c2147483647_i32 : i32 to vector<8x8xi32>
    %14 = arith.andi %10, %13 : vector<8x8xi32>
    %cst_7 = arith.constant dense<-1> : vector<8x8xi32>
    %15 = arith.xori %14, %cst_7 : vector<8x8xi32>
    %16 = arith.select %12, %15, %10 : vector<8x8xi1>, vector<8x8xi32>
    %c7_i32 = arith.constant 7 : i32
    %c-1_i32 = arith.constant -1 : i32
    %17 = arith.xori %c7_i32, %c-1_i32 : i32
    %18 = vector.broadcast %17 : i32 to vector<8x8xi32>
    %19 = arith.andi %16, %18 : vector<8x8xi32>
    %c7_i32_8 = arith.constant 7 : i32
    %20 = vector.broadcast %c7_i32_8 : i32 to vector<8x8xi32>
    %21 = arith.subi %20, %8 : vector<8x8xi32>
    %22 = arith.ori %19, %21 : vector<8x8xi32>
    %c0_i32_9 = arith.constant 0 : i32
    %23 = vector.broadcast %c0_i32_9 : i32 to vector<8x2xi32>
    %cst_10 = arith.constant dense<-2147483648> : vector<8xi32>
    %24 = vector.multi_reduction <maxsi>, %22, %cst_10 [1] : vector<8x8xi32> to vector<8xi32>
    %25 = vector.shape_cast %24 : vector<8xi32> to vector<8x1xi32>
    %c7_i32_11 = arith.constant 7 : i32
    %26 = vector.broadcast %c7_i32_11 : i32 to vector<8x1xi32>
    %27 = arith.andi %25, %26 : vector<8x1xi32>
    %c7_i32_12 = arith.constant 7 : i32
    %28 = vector.broadcast %c7_i32_12 : i32 to vector<8x1xi32>
    %29 = arith.subi %28, %27 : vector<8x1xi32>
    %30 = vector.broadcast %29 : vector<8x1xi32> to vector<8x8xi32>
    %31 = arith.cmpi eq, %8, %30 : vector<8x8xi32>
    %c-2147483648_i32 = arith.constant -2147483648 : i32
    %32 = vector.broadcast %c-2147483648_i32 : i32 to vector<8x8xi32>
    %33 = arith.select %31, %32, %22 : vector<8x8xi1>, vector<8x8xi32>
    %c0_i32_13 = arith.constant 0 : i32
    %34 = vector.broadcast %c0_i32_13 : i32 to vector<8x2xi32>
    %35 = arith.cmpi eq, %9, %34 : vector<8x2xi32>
    %36 = vector.shape_cast %29 : vector<8x1xi32> to vector<8x1xi32>
    %37 = vector.broadcast %36 : vector<8x1xi32> to vector<8x2xi32>
    %38 = arith.select %35, %37, %23 : vector<8x2xi1>, vector<8x2xi32>
    %cst_14 = arith.constant dense<-2147483648> : vector<8xi32>
    %39 = vector.multi_reduction <maxsi>, %33, %cst_14 [1] : vector<8x8xi32> to vector<8xi32>
    %40 = vector.shape_cast %39 : vector<8xi32> to vector<8x1xi32>
    %c7_i32_15 = arith.constant 7 : i32
    %41 = vector.broadcast %c7_i32_15 : i32 to vector<8x1xi32>
    %42 = arith.andi %40, %41 : vector<8x1xi32>
    %c7_i32_16 = arith.constant 7 : i32
    %43 = vector.broadcast %c7_i32_16 : i32 to vector<8x1xi32>
    %44 = arith.subi %43, %42 : vector<8x1xi32>
    %45 = vector.broadcast %44 : vector<8x1xi32> to vector<8x8xi32>
    %46 = arith.cmpi eq, %8, %45 : vector<8x8xi32>
    %c-2147483648_i32_17 = arith.constant -2147483648 : i32
    %47 = vector.broadcast %c-2147483648_i32_17 : i32 to vector<8x8xi32>
    %48 = arith.select %46, %47, %33 : vector<8x8xi1>, vector<8x8xi32>
    %c1_i32 = arith.constant 1 : i32
    %49 = vector.broadcast %c1_i32 : i32 to vector<8x2xi32>
    %50 = arith.cmpi eq, %9, %49 : vector<8x2xi32>
    %51 = vector.shape_cast %44 : vector<8x1xi32> to vector<8x1xi32>
    %52 = vector.broadcast %51 : vector<8x1xi32> to vector<8x2xi32>
    %53 = arith.select %50, %52, %38 : vector<8x2xi1>, vector<8x2xi32>
    %c0_18 = arith.constant 0 : index
    %c0_19 = arith.constant 0 : index
    %54 = vector.load %arg5[%c0_18, %c0_19] : memref<8x2xi32, #tpu.memory_space<vmem>>, vector<8x2xi32>
    tpu.vector_store %arg5[%c0_18, %c0_19], %53 {strides = array<i32>} : memref<8x2xi32, #tpu.memory_space<vmem>>, vector<8x2xi32>,
    %c-2147483648_i32_20 = arith.constant -2147483648 : i32
    %55 = vector.broadcast %c-2147483648_i32_20 : i32 to vector<8x8xi32>
    %56 = arith.cmpi eq, %48, %55 : vector<8x8xi32>
    %cst_21 = arith.constant dense<0xFF800000> : vector<8xf32>
    %57 = vector.multi_reduction <maximumf>, %6, %cst_21 [1] : vector<8x8xf32> to vector<8xf32>
    %58 = vector.shape_cast %57 : vector<8xf32> to vector<8x1xf32>
    %59 = vector.broadcast %58 : vector<8x1xf32> to vector<8x8xf32>
    %60 = arith.subf %6, %59 : vector<8x8xf32>
    %61 = math.exp %60 : vector<8x8xf32>
    %cst_22 = arith.constant 0.000000e+00 : f32
    %62 = vector.broadcast %cst_22 : f32 to vector<8x8xf32>
    %63 = arith.select %56, %61, %62 : vector<8x8xi1>, vector<8x8xf32>
    %cst_23 = arith.constant dense<0.000000e+00> : vector<8xf32>
    %64 = vector.multi_reduction <add>, %63, %cst_23 [1] : vector<8x8xf32> to vector<8xf32>
    %65 = vector.shape_cast %64 : vector<8xf32> to vector<8x1xf32>
    %66 = vector.broadcast %65 : vector<8x1xf32> to vector<8x8xf32>
    %67 = arith.divf %63, %66 : vector<8x8xf32>
    %c0_24 = arith.constant 0 : index
    %c0_25 = arith.constant 0 : index
    %68 = vector.load %arg4[%c0_24, %c0_25] : memref<8x8xf32, #tpu.memory_space<vmem>>, vector<8x8xf32>
    tpu.vector_store %arg4[%c0_24, %c0_25], %67 {strides = array<i32>} : memref<8x8xf32, #tpu.memory_space<vmem>>, vector<8x8xf32>,
    return
  }
  func.func @transform_0(%arg0: i32) -> (i32, i32) {
    %c0_i32 = arith.constant 0 : i32
    %c0_i32_0 = arith.constant 0 : i32
    return %arg0, %c0_i32 : i32, i32
  }
  func.func @transform_1(%arg0: i32) -> (i32, i32) {
    %c0_i32 = arith.constant 0 : i32
    %c0_i32_0 = arith.constant 0 : i32
    %c0_i32_1 = arith.constant 0 : i32
    return %c0_i32, %c0_i32_0 : i32, i32
  }
  func.func @transform_2(%arg0: i32) -> (i32, i32) {
    %c0_i32 = arith.constant 0 : i32
    %c0_i32_0 = arith.constant 0 : i32
    %c0_i32_1 = arith.constant 0 : i32
    return %c0_i32, %c0_i32_0 : i32, i32
  }
  func.func @transform_3(%arg0: i32) -> (i32, i32) {
    %c0_i32 = arith.constant 0 : i32
    %c0_i32_0 = arith.constant 0 : i32
    return %arg0, %c0_i32 : i32, i32
  }
  func.func @transform_4(%arg0: i32) -> (i32, i32) {
    %c0_i32 = arith.constant 0 : i32
    %c0_i32_0 = arith.constant 0 : i32
    return %arg0, %c0_i32 : i32, i32
  }
  func.func @transform_5(%arg0: i32) -> (i32, i32) {
    %c0_i32 = arith.constant 0 : i32
    %c0_i32_0 = arith.constant 0 : i32
    return %arg0, %c0_i32 : i32, i32
  }
}

</mosaic_0001>

<llo_original>
// kernel: tpu_custom_call.1
$region0: #{tpu_custom_call.1}
  #allocation0 [shape = 'u32[]', space=smem, size = 0x4, offset = 0x4, fixed_abs, tag = 'smem constant byte address 0x4 - core index']
  #allocation1 [shape = 'u32[144,128]{1,0:T(1,128)}', space=vmem, size = 0x12000, scoped, tag = 'internal scratch']
  %s0 = inlined_call_operand.vmem [shape: f32[16,32], index: 0, kind: input, shape index: {}]
  %s1 = inlined_call_operand.vmem [shape: bf16[32,8], index: 1, kind: input, shape index: {}]
  %s2 = inlined_call_operand.vmem [shape: f32[1,8], index: 2, kind: input, shape index: {}]
  %s3 = inlined_call_operand.vmem [shape: f32[16,8], index: 3, kind: output, shape index: {0}]
  %s4 = inlined_call_operand.vmem [shape: s32[16,2], index: 4, kind: output, shape index: {1}]
  %s5 = inlined_call_operand.vmem [shape: f32[16,8], index: 5, kind: output, shape index: {2}]
  %6 = xla_tuple %s3, %s4, %s5
  %s7 = sld [smem:[#allocation0]]
  $region61: #{tpu_custom_call.1} parent=0
    _
  %s9 = ssub.s32 1, %s7
  %s10 = scalar_select 0, %s9, %s7
  loop: start=0, step=1, limit=4
  $region2: #{tpu_custom_call.1} parent=0 // loop_pre_header
    _
  $region3: #{tpu_custom_call.1} parent=0 // loop_header
    %s12 = sphi 0, %s16
    %p13 = scmp.ge.s32.totalorder %s12, 4
    %s22 = sphi 0, %s24
    %s25 = sphi 0, %s22
    %s26 = sphi 0, %s25
    %s42 = sphi 0, %s26
    %s46 = sphi 0, %s46
    %s48 = sphi 0, %s46
    %s49 = sphi 0, %s48
    %s63 = sphi 0, %s49
    %s67 = sphi 0, %s67
    %s69 = sphi 0, %s67
    %s70 = sphi 0, %s69
    %s84 = sphi 0, %s70
    %s90 = sphi 0, %s92
    %s93 = sphi 0, %s90
    %s94 = sphi 0, %s93
    %s110 = sphi 0, %s94
    %s116 = sphi 0, %s118
    %s119 = sphi 0, %s116
    %s120 = sphi 0, %s119
    %s136 = sphi 0, %s120
    %s142 = sphi 0, %s144
    %s145 = sphi 0, %s142
    %s146 = sphi 0, %s145
    %s162 = sphi 0, %s146
  $region4: #{tpu_custom_call.1} parent=0 // loop_header_branch
    %15 = sbr.rel (%p13) target = $region8
  $region5: #{tpu_custom_call.1} parent=0 // loop_body
    %s17 = ssub.s32 %s12, 1
    %s18 = ssub.s32 %s12, 2
    %s19 = sadd.s32 %s12, 1
    %s20 = ssub.s32 %s12, %s19
    %p21 = scmp.eq.s32.totalorder %s20, 0
    %s23 = sadd.s32 %s22, 1
    %s24 = scalar_select %p21, %s22, %s23
    %p27 = pneg %p21
    %p28 = scmp.eq.s32.totalorder %s12, 1
    %p29 = por %p27, %p28
    %p30 = scmp.ne.s32.totalorder %s22, %s25
    %p31 = scmp.eq.s32.totalorder %s12, 0
    %p32 = por %p30, %p31
    %p33 = scmp.ne.s32.totalorder %s22, %s25
    %p34 = scmp.eq.s32.totalorder %s17, 1
    %p35 = por %p33, %p34
    %p36 = scmp.ne.s32.totalorder %s25, %s26
    %p37 = scmp.eq.s32.totalorder %s17, 0
    %p38 = por %p36, %p37
    %p39 = scmp.ne.s32.totalorder %s25, %s26
    %p40 = scmp.eq.s32.totalorder %s18, 1
    %p41 = por %p39, %p40
    %p43 = scmp.ne.s32.totalorder %s26, %s42
    %p44 = scmp.eq.s32.totalorder %s18, 0
    %p45 = por %p43, %p44
    %s47 = sadd.s32 %s46, 1
    %p50 = scmp.eq.s32.totalorder %s12, 1
    %p51 = scmp.ne.s32.totalorder %s46, %s48
    %p52 = scmp.eq.s32.totalorder %s12, 0
    %p53 = por %p51, %p52
    %p54 = scmp.ne.s32.totalorder %s46, %s48
    %p55 = scmp.eq.s32.totalorder %s17, 1
    %p56 = por %p54, %p55
    %p57 = scmp.ne.s32.totalorder %s48, %s49
    %p58 = scmp.eq.s32.totalorder %s17, 0
    %p59 = por %p57, %p58
    %p60 = scmp.ne.s32.totalorder %s48, %s49
    %p61 = scmp.eq.s32.totalorder %s18, 1
    %p62 = por %p60, %p61
    %p64 = scmp.ne.s32.totalorder %s49, %s63
    %p65 = scmp.eq.s32.totalorder %s18, 0
    %p66 = por %p64, %p65
    %s68 = sadd.s32 %s67, 1
    %p71 = scmp.eq.s32.totalorder %s12, 1
    %p72 = scmp.ne.s32.totalorder %s67, %s69
    %p73 = scmp.eq.s32.totalorder %s12, 0
    %p74 = por %p72, %p73
    %p75 = scmp.ne.s32.totalorder %s67, %s69
    %p76 = scmp.eq.s32.totalorder %s17, 1
    %p77 = por %p75, %p76
    %p78 = scmp.ne.s32.totalorder %s69, %s70
    %p79 = scmp.eq.s32.totalorder %s17, 0
    %p80 = por %p78, %p79
    %p81 = scmp.ne.s32.totalorder %s69, %s70
    %p82 = scmp.eq.s32.totalorder %s18, 1
    %p83 = por %p81, %p82
    %p85 = scmp.ne.s32.totalorder %s70, %s84
    %p86 = scmp.eq.s32.totalorder %s18, 0
    %p87 = por %p85, %p86
    %s88 = ssub.s32 %s12, %s19
    %p89 = scmp.eq.s32.totalorder %s88, 0
    %s91 = sadd.s32 %s90, 1
    %s92 = scalar_select %p89, %s90, %s91
    %p95 = pneg %p89
    %p96 = scmp.eq.s32.totalorder %s12, 1
    %p97 = por %p95, %p96
    %p98 = scmp.ne.s32.totalorder %s90, %s93
    %p99 = scmp.eq.s32.totalorder %s12, 0
    %p100 = por %p98, %p99
    %p101 = scmp.ne.s32.totalorder %s90, %s93
    %p102 = scmp.eq.s32.totalorder %s17, 1
    %p103 = por %p101, %p102
    %p104 = scmp.ne.s32.totalorder %s93, %s94
    %p105 = scmp.eq.s32.totalorder %s17, 0
    %p106 = por %p104, %p105
    %p107 = scmp.ne.s32.totalorder %s93, %s94
    %p108 = scmp.eq.s32.totalorder %s18, 1
    %p109 = por %p107, %p108
    %p111 = scmp.ne.s32.totalorder %s94, %s110
    %p112 = scmp.eq.s32.totalorder %s18, 0
    %p113 = por %p111, %p112
    %s114 = ssub.s32 %s12, %s19
    %p115 = scmp.eq.s32.totalorder %s114, 0
    %s117 = sadd.s32 %s116, 1
    %s118 = scalar_select %p115, %s116, %s117
    %p121 = pneg %p115
    %p122 = scmp.eq.s32.totalorder %s12, 1
    %p123 = por %p121, %p122
    %p124 = scmp.ne.s32.totalorder %s116, %s119
    %p125 = scmp.eq.s32.totalorder %s12, 0
    %p126 = por %p124, %p125
    %p127 = scmp.ne.s32.totalorder %s116, %s119
    %p128 = scmp.eq.s32.totalorder %s17, 1
    %p129 = por %p127, %p128
    %p130 = scmp.ne.s32.totalorder %s119, %s120
    %p131 = scmp.eq.s32.totalorder %s17, 0
    %p132 = por %p130, %p131
    %p133 = scmp.ne.s32.totalorder %s119, %s120
    %p134 = scmp.eq.s32.totalorder %s18, 1
    %p135 = por %p133, %p134
    %p137 = scmp.ne.s32.totalorder %s120, %s136
    %p138 = scmp.eq.s32.totalorder %s18, 0
    %p139 = por %p137, %p138
    %s140 = ssub.s32 %s12, %s19
    %p141 = scmp.eq.s32.totalorder %s140, 0
    %s143 = sadd.s32 %s142, 1
    %s144 = scalar_select %p141, %s142, %s143
    %p147 = pneg %p141
    %p148 = scmp.eq.s32.totalorder %s12, 1
    %p149 = por %p147, %p148
    %p150 = scmp.ne.s32.totalorder %s142, %s145
    %p151 = scmp.eq.s32.totalorder %s12, 0
    %p152 = por %p150, %p151
    %p153 = scmp.ne.s32.totalorder %s142, %s145
    %p154 = scmp.eq.s32.totalorder %s17, 1
    %p155 = por %p153, %p154
    %p156 = scmp.ne.s32.totalorder %s145, %s146
    %p157 = scmp.eq.s32.totalorder %s17, 0
    %p158 = por %p156, %p157
    %p159 = scmp.ne.s32.totalorder %s145, %s146
    %p160 = scmp.eq.s32.totalorder %s18, 1
    %p161 = por %p159, %p160
    %p163 = scmp.ne.s32.totalorder %s146, %s162
    %p164 = scmp.eq.s32.totalorder %s18, 0
    %p165 = por %p163, %p164
    %p166 = scmp.le.s32.totalorder 1, %s12
    %p167 = scmp.lt.s32.totalorder %s12, 3
    %p168 = pnand %p166, %p167
    %p169 = pneg %p168
    // Predicated region
    $region9: #{tpu_custom_call.1} parent=5 // pred_check
      _
    $region10: #{tpu_custom_call.1} parent=5 // pred_check_branch
      %171 = sbr.rel (%p168) target = $region12
    $region11: #{tpu_custom_call.1} parent=5 // pred_region
      %s172 = ssub.s32 %s12, 1
      // Predicated region
      $region13: #{tpu_custom_call.1} parent=11 // pred_check
        %p173 = pneg %p59
      $region14: #{tpu_custom_call.1} parent=11 // pred_check_branch
        %175 = sbr.rel (%p173) target = $region16
      $region15: #{tpu_custom_call.1} parent=11 // pred_region
        _
      $region16: #{tpu_custom_call.1} parent=11 // pred_fallthru
        _
      // Predicated region
      $region17: #{tpu_custom_call.1} parent=11 // pred_check
        %p176 = pneg %p80
      $region18: #{tpu_custom_call.1} parent=11 // pred_check_branch
        %178 = sbr.rel (%p176) target = $region20
      $region19: #{tpu_custom_call.1} parent=11 // pred_region
        _
      $region20: #{tpu_custom_call.1} parent=11 // pred_fallthru
        _
    $region12: #{tpu_custom_call.1} parent=5 // pred_fallthru
      _
    %p179 = scmp.lt.s32.totalorder %s12, 2
    // Predicated region
    $region21: #{tpu_custom_call.1} parent=5 // pred_check
      %p180 = pneg %p179
    $region22: #{tpu_custom_call.1} parent=5 // pred_check_branch
      %182 = sbr.rel (%p180) target = $region24
    $region23: #{tpu_custom_call.1} parent=5 // pred_region
      // Predicated region
      $region25: #{tpu_custom_call.1} parent=23 // pred_check
        %p183 = pneg %p32
      $region26: #{tpu_custom_call.1} parent=23 // pred_check_branch
        %185 = sbr.rel (%p183) target = $region28
      $region27: #{tpu_custom_call.1} parent=23 // pred_region
        %p186 = scmp.lt.s32.totalorder %s12, 1
        %s187 = scalar_select %p186, %s12, 1
        %s188 = smul.addr %s187, 8
        %s189 = scalar_lea.vmem %s0, %s188
      $region28: #{tpu_custom_call.1} parent=23 // pred_fallthru
        _
    $region24: #{tpu_custom_call.1} parent=5 // pred_fallthru
      _
    %p190 = scmp.le.s32.totalorder 1, %s12
    %p191 = scmp.lt.s32.totalorder %s12, 3
    %p192 = pnand %p190, %p191
    %p193 = pneg %p192
    // Predicated region
    $region29: #{tpu_custom_call.1} parent=5 // pred_check
      _
    $region30: #{tpu_custom_call.1} parent=5 // pred_check_branch
      %195 = sbr.rel (%p192) target = $region32
    $region31: #{tpu_custom_call.1} parent=5 // pred_region
      %s196 = ssub.s32 %s12, 1
      %p197 = scmp.lt.s32.totalorder %s17, 1
      %s198 = scalar_select %p197, %s17, 1
      %s199 = smul.addr %s198, 8
      %s200 = scalar_lea.vmem %s0, %s199
      %p201 = pneg %p38
      %p202 = pneg %p35
      %p203 = pneg %p59
      %p204 = pneg %p56
      %p205 = pneg %p80
      %p206 = pneg %p77
      %p207 = pneg %p106
      %p208 = pneg %p103
      %p209 = scmp.lt.s32.totalorder %s17, 1
      %s210 = scalar_select %p209, %s17, 1
      %s211 = smul.addr %s210, 8
      %s212 = scalar_lea.vmem %s3, %s211
      %p213 = pneg %p132
      %p214 = pneg %p129
      %p215 = scmp.lt.s32.totalorder %s17, 1
      %s216 = scalar_select %p215, %s17, 1
      %s217 = smul.addr %s216, 8
      %s218 = scalar_lea.vmem %s4, %s217
      %p219 = pneg %p158
      %p220 = pneg %p155
      %p221 = scmp.lt.s32.totalorder %s17, 1
      %s222 = scalar_select %p221, %s17, 1
      %s223 = smul.addr %s222, 8
      %s224 = scalar_lea.vmem %s5, %s223
      %p225 = scmp.lt.s32.totalorder %s17, 1
      %s226 = scalar_select %p225, %s17, 1
      %s227 = smul.addr %s226, 8
      %s228 = scalar_lea.vmem %s0, %s227
      %p229 = scmp.lt.s32.totalorder %s17, 1
      %s230 = scalar_select %p229, %s17, 1
      %s231 = smul.addr %s230, 8
      %s232 = scalar_lea.vmem %s3, %s231
      %p233 = scmp.lt.s32.totalorder %s17, 1
      %s234 = scalar_select %p233, %s17, 1
      %s235 = smul.addr %s234, 8
      %s236 = scalar_lea.vmem %s4, %s235
      %p237 = scmp.lt.s32.totalorder %s17, 1
      %s238 = scalar_select %p237, %s17, 1
      %s239 = smul.addr %s238, 8
      %s240 = scalar_lea.vmem %s5, %s239
      %v242 = vld [vmem:[%s228] sm:$0xff]
      %v243 = vpack.c.bf16 %v242, %v242
      %v244 = vld [vmem:[%s1] sm:$0xf]
      %v245 = vld [vmem:[%s1 + $0x4] sm:$0xf]
      %v246 = vld [vmem:[%s1 + $0x8] sm:$0xf]
      %v247 = vld [vmem:[%s1 + $0xc] sm:$0xf]
      %v248 = vld [vmem:[%s2] sm:$0x1]
      %v250 = vlaneseq
      %v251 = vshrl.u32 %v250, 7
      %v252 = vsub.s32 0, %v251
      %v253 = vrot.slane %v248, %v252
      %v259 = vunpack.c.l.b16 %v244
      %v260 = vunpack.c.l.b16 %v245
      %v261 = vunpack.c.l.b16 %v246
      %v262 = vunpack.c.l.b16 %v247
      %v263 = vpack.c.b16 %v260, %v259
      %v264 = vpack.c.b16 %v262, %v261
      %vm267 = vcmask 261120
      %v269 = vsel %vm267, %v243, 0
      %271 = vmatprep.subr.bf16.mxu0 0
      %272 = vmatpush1.bf16.msra.mxu0 %v263
      %273 = vmatprep.subr.bf16.mxu0 0
      %274 = vmatpush1.bf16.msra.mxu0 %v264
      %275 = vmatprep.subr.bf16.mxu0 0
      %276 = vmatpush1.bf16.msra.mxu0 0
      %277 = vmatprep.subr.bf16.mxu0 0
      %278 = vmatpush1.bf16.msra.mxu0 0
      %279 = vmatprep.subr.bf16.mxu0 0
      %280 = vmatpush1.bf16.msra.mxu0 0
      %281 = vmatprep.subr.bf16.mxu0 0
      %282 = vmatpush1.bf16.msra.mxu0 0
      %283 = vmatprep.subr.bf16.mxu0 0
      %284 = vmatpush1.bf16.msra.mxu0 0
      %285 = vmatprep.subr.bf16.mxu0 0
      %286 = vmatpush1.bf16.msra.mxu0 0
      %287 = vmatprep.subr.bf16.mxu0 0
      %288 = vmatpush1.bf16.msra.mxu0 0
      %289 = vmatprep.subr.bf16.mxu0 0
      %290 = vmatpush1.bf16.msra.mxu0 0
      %291 = vmatprep.subr.bf16.mxu0 0
      %292 = vmatpush1.bf16.msra.mxu0 0
      %293 = vmatprep.subr.bf16.mxu0 0
      %294 = vmatpush1.bf16.msra.mxu0 0
      %295 = vmatprep.subr.bf16.mxu0 0
      %296 = vmatpush1.bf16.msra.mxu0 0
      %297 = vmatprep.subr.bf16.mxu0 0
      %298 = vmatpush1.bf16.msra.mxu0 0
      %299 = vmatprep.subr.bf16.mxu0 0
      %300 = vmatpush1.bf16.msra.mxu0 0
      %301 = vmatprep.subr.bf16.mxu0 0
      %302 = vmatpush1.bf16.msra.mxu0 0
      %303 = vmatprep.mubr.bf16.mxu0 0
      %304 = vmatmul.mubr.bf16.gmra.mrb[0].mxu0 %v269
      %v305 = vpop.f32.mrb[0].mxu0
      %v306 = vadd.f32 %v253, %v305
      %v307 = vpop.f32.mrb[0].mxu0
      %v308 = vpop.f32.mrb[0].mxu0
      %v309 = vpop.f32.mrb[0].mxu0
      %310 = vdwg.mxu0
      %vm311 = vcmask 64512
      %312 = vst.msk [vmem:[%s240] sm:$0xff] %vm311, %v306
      %v313 = vlaneseq
      %v314 = vand.u32 %v313, 127
      %vm316 = vcmp.lt.s32.totalorder %v306, 0
      %v317 = vand.u32 %v306, 2147483647
      %v318 = vxor.u32 %v317, 4294967295
      %v319 = vsel %vm316, %v318, %v306
      %v320 = vand.u32 %v319, 4294967288
      %v321 = vsub.s32 7, %v314
      %v322 = vor.u32 %v320, %v321
      %v323 = vsel %vm311, %v322, 2147483648
      %v324 = vand.u32 %v323, 65535
      %v325 = vshra.s32 %v323, 16
      %v326 = vcvt.s32.f32 %v324
      %v327 = vcvt.s32.f32 %v325
      %328 = vmax.xlane.f32.xlu0 %v327
      %v329 = vpop.xlane.xlu0 %328
      %vm330 = vcmp.eq.f32.partialorder %v327, %v329
      %v331 = vsel %vm330, %v326, -inf
      %332 = vmax.xlane.f32.xlu0 %v331
      %v333 = vpop.xlane.xlu0 %332
      %v334 = vcvt.f32.s32 %v333
      %v335 = vcvt.f32.s32 %v329
      %v336 = vshll.u32 %v335, 16
      %v337 = vadd.s32 %v336, %v334
      %v338 = vand.u32 %v337, 7
      %v339 = vsub.s32 7, %v338
      %vm340 = vcmp.eq.s32.totalorder %v314, %v339
      %v341 = vsel %vm340, 2147483648, %v322
      %vm342 = vcmp.eq.s32.totalorder %v314, 0
      %v343 = vsel %vm342, %v339, 0
      %v344 = vsel %vm311, %v341, 2147483648
      %v345 = vand.u32 %v344, 65535
      %v346 = vshra.s32 %v344, 16
      %v347 = vcvt.s32.f32 %v345
      %v348 = vcvt.s32.f32 %v346
      %349 = vmax.xlane.f32.xlu0 %v348
      %v350 = vpop.xlane.xlu0 %349
      %vm351 = vcmp.eq.f32.partialorder %v348, %v350
      %v352 = vsel %vm351, %v347, -inf
      %353 = vmax.xlane.f32.xlu0 %v352
      %v354 = vpop.xlane.xlu0 %353
      %v355 = vcvt.f32.s32 %v354
      %v356 = vcvt.f32.s32 %v350
      %v357 = vshll.u32 %v356, 16
      %v358 = vadd.s32 %v357, %v355
      %v359 = vand.u32 %v358, 7
      %v360 = vsub.s32 7, %v359
      %vm361 = vcmp.eq.s32.totalorder %v314, %v360
      %v362 = vsel %vm361, 2147483648, %v341
      %vm363 = vcmp.eq.s32.totalorder %v314, 1
      %v364 = vsel %vm363, %v360, %v343
      %vm365 = vcmask 15360
      %366 = vst.msk [vmem:[%s236] sm:$0xff] %vm365, %v364
      %vm367 = vcmp.eq.s32.totalorder %v362, 2147483648
      %v368 = vsel %vm311, %v306, -inf
      %369 = vmax.xlane.f32.xlu0 %v368
      %v370 = vpop.xlane.xlu0 %369
      %v371 = vsub.f32 %v306, %v370
      %v372 = vmul.f32 %v371, 1.442695
      %v373 = vpow.pop %v372
      %v374 = vsel %vm367, %v373, 0.0
      %v375 = vsel %vm311, %v374, 0.0
      %376 = vadd.xlane.f32.xlu0 %v375
      %v377 = vpop.xlane.xlu0 %376
      %v378 = vrcp.pop %v377
      %v379 = vmul.f32 %v374, %v378
      %380 = vst.msk [vmem:[%s232] sm:$0xff] %vm311, %v379
      %p381 = scmp.lt.s32.totalorder %s17, 1
      %s382 = scalar_select %p381, %s17, 1
      %s383 = smul.addr %s382, 8
      %s384 = scalar_lea.vmem %s3, %s383
      %p385 = scmp.lt.s32.totalorder %s17, 1
      %s386 = scalar_select %p385, %s17, 1
      %s387 = smul.addr %s386, 8
      %s388 = scalar_lea.vmem %s4, %s387
      %p389 = scmp.lt.s32.totalorder %s17, 1
      %s390 = scalar_select %p389, %s17, 1
      %s391 = smul.addr %s390, 8
      %s392 = scalar_lea.vmem %s5, %s391
      // Predicated region
      $region33: #{tpu_custom_call.1} parent=31 // pred_check
        %p393 = pneg %p103
      $region34: #{tpu_custom_call.1} parent=31 // pred_check_branch
        %395 = sbr.rel (%p393) target = $region36
      $region35: #{tpu_custom_call.1} parent=31 // pred_region
        _
      $region36: #{tpu_custom_call.1} parent=31 // pred_fallthru
        _
      // Predicated region
      $region37: #{tpu_custom_call.1} parent=31 // pred_check
        %p396 = pneg %p129
      $region38: #{tpu_custom_call.1} parent=31 // pred_check_branch
        %398 = sbr.rel (%p396) target = $region40
      $region39: #{tpu_custom_call.1} parent=31 // pred_region
        _
      $region40: #{tpu_custom_call.1} parent=31 // pred_fallthru
        _
      // Predicated region
      $region41: #{tpu_custom_call.1} parent=31 // pred_check
        %p399 = pneg %p155
      $region42: #{tpu_custom_call.1} parent=31 // pred_check_branch
        %401 = sbr.rel (%p399) target = $region44
      $region43: #{tpu_custom_call.1} parent=31 // pred_region
        _
      $region44: #{tpu_custom_call.1} parent=31 // pred_fallthru
        _
    $region32: #{tpu_custom_call.1} parent=5 // pred_fallthru
      _
    %p402 = scmp.le.s32.totalorder 2, %s12
    // Predicated region
    $region45: #{tpu_custom_call.1} parent=5 // pred_check
      %p403 = pneg %p402
    $region46: #{tpu_custom_call.1} parent=5 // pred_check_branch
      %405 = sbr.rel (%p403) target = $region48
    $region47: #{tpu_custom_call.1} parent=5 // pred_region
      %s406 = ssub.s32 %s12, 2
      // Predicated region
      $region49: #{tpu_custom_call.1} parent=47 // pred_check
        %p407 = pneg %p109
      $region50: #{tpu_custom_call.1} parent=47 // pred_check_branch
        %409 = sbr.rel (%p407) target = $region52
      $region51: #{tpu_custom_call.1} parent=47 // pred_region
        %p410 = scmp.lt.s32.totalorder %s18, 1
        %s411 = scalar_select %p410, %s18, 1
        %s412 = smul.addr %s411, 8
        %s413 = scalar_lea.vmem %s3, %s412
      $region52: #{tpu_custom_call.1} parent=47 // pred_fallthru
        _
      // Predicated region
      $region53: #{tpu_custom_call.1} parent=47 // pred_check
        %p414 = pneg %p135
      $region54: #{tpu_custom_call.1} parent=47 // pred_check_branch
        %416 = sbr.rel (%p414) target = $region56
      $region55: #{tpu_custom_call.1} parent=47 // pred_region
        %p417 = scmp.lt.s32.totalorder %s18, 1
        %s418 = scalar_select %p417, %s18, 1
        %s419 = smul.addr %s418, 8
        %s420 = scalar_lea.vmem %s4, %s419
      $region56: #{tpu_custom_call.1} parent=47 // pred_fallthru
        _
      // Predicated region
      $region57: #{tpu_custom_call.1} parent=47 // pred_check
        %p421 = pneg %p161
      $region58: #{tpu_custom_call.1} parent=47 // pred_check_branch
        %423 = sbr.rel (%p421) target = $region60
      $region59: #{tpu_custom_call.1} parent=47 // pred_region
        %p424 = scmp.lt.s32.totalorder %s18, 1
        %s425 = scalar_select %p424, %s18, 1
        %s426 = smul.addr %s425, 8
        %s427 = scalar_lea.vmem %s5, %s426
      $region60: #{tpu_custom_call.1} parent=47 // pred_fallthru
        _
    $region48: #{tpu_custom_call.1} parent=5 // pred_fallthru
      _
  $region6: #{tpu_custom_call.1} parent=0 // loop_footer
    %s16 = sadd.s32 1, %s12
  $region7: #{tpu_custom_call.1} parent=0 // loop_footer_branch
    %11 = sbr.rel target = $region3
  $region8: #{tpu_custom_call.1} parent=0 // loop_exit
    _

</llo_original>
